<compile_context>
chip_gen: v6e
topology: v6e:2x2x1
jax: 0.10.0
libtpu: 0.0.40
codegen_flags: <defaults>
</compile_context>

<pallas_src>
import jax
import jax.numpy as jnp
from jax.experimental import pallas as pl
from jax.experimental.pallas import tpu as pltpu


# Layer sizes (from the PyTorch module).
D_IN, D_H1, D_H2, D_OUT = 30, 24, 36, 1

# Packed-bias layout (sublane offsets 8-aligned so the in-kernel slices are trivial).
_B1_OFF, _B2_OFF, _B3_OFF, _BPACK_ROWS = 0, 32, 72, 80


def policy_net_kernel(x_ref, w1_ref, w2_ref, w3_ref, b_ref, out_ref):
    """One batch block.
    x_ref: (TB, 30) f32; w1/w2/w3 PyTorch-layout (out, in); b_ref: (80, 1)
    packed biases; out_ref: (1, TB) f32 (batch in lanes)."""
    x = x_ref[...]                                             # (TB, 30) f32

    # fc1 + ReLU: contract the two 30-feature axes -> (24, TB), batch in lanes.
    h1 = jax.lax.dot_general(
        w1_ref[...], x,
        dimension_numbers=(((1,), (1,)), ((), ())),
        preferred_element_type=jnp.float32)                    # (24, TB)
    h1 = jnp.maximum(h1 + b_ref[_B1_OFF:_B1_OFF + D_H1, :], 0.0)

    # fc2 + ReLU: (36, 24) @ (24, TB) -> (36, TB).
    h2 = jnp.dot(w2_ref[...], h1, preferred_element_type=jnp.float32)
    h2 = jnp.maximum(h2 + b_ref[_B2_OFF:_B2_OFF + D_H2, :], 0.0)

    # fc3 + sigmoid: (1, 36) @ (36, TB) -> (1, TB); lane-dense store.
    h3 = jnp.dot(w3_ref[...], h2, preferred_element_type=jnp.float32)
    out_ref[...] = jax.nn.sigmoid(h3 + b_ref[_B3_OFF:_B3_OFF + D_OUT, :])


def _round_up(n, m):
    return ((n + m - 1) // m) * m


def _choose_block_rows(batch, block_rows):
    """Batch tile: one full block for tiny batches; otherwise a multiple of 128
    aimed at >= 8 grid steps (pipeline + v7x megacore), capped at block_rows."""
    if batch <= 128:
        return batch                        # block == full array dims (allowed)
    tb = _round_up(pl.cdiv(batch, 8), 128)
    return max(128, min(block_rows, tb))


def pack_biases(b1, b2, b3):
    """Pack the three bias vectors into one (80, 1) f32 column. Call once,
    outside the forward hot path."""
    b = jnp.zeros((_BPACK_ROWS, 1), jnp.float32)
    b = b.at[_B1_OFF:_B1_OFF + D_H1, 0].set(b1.astype(jnp.float32))
    b = b.at[_B2_OFF:_B2_OFF + D_H2, 0].set(b2.astype(jnp.float32))
    b = b.at[_B3_OFF:_B3_OFF + D_OUT, 0].set(b3.astype(jnp.float32))
    return b


def policy_net_forward(x, w1, w2, w3, b_packed, *, block_rows=8192):
    """x: (B, 30) float32 -> (B, 1) float32.
    w1/w2/w3 are PyTorch-layout (out, in); b_packed comes from pack_biases()."""
    B, F = x.shape
    assert F == D_IN
    x = x.astype(jnp.float32)

    TB = _choose_block_rows(B, block_rows)
    n_blocks = pl.cdiv(B, TB)

    # Parameters: constant block index across the batch grid -> stay resident.
    const = lambda arr: pl.BlockSpec(arr.shape, lambda i: (0, 0))

    flops = 2 * B * (D_IN * D_H1 + D_H1 * D_H2 + D_H2 * D_OUT)
    bytes_accessed = (x.size * 4 + B * 4
                      + (w1.size + w2.size + w3.size + b_packed.size) * 4)

    out = pl.pallas_call(
        policy_net_kernel,
        out_shape=jax.ShapeDtypeStruct((1, B), jnp.float32),
        grid=(n_blocks,),
        in_specs=[
            # x streamed per block (f32 straight from HBM).
            # If a v5e profile still shows this DMA exposed, add
            # pipeline_mode=pl.Buffered(3) here; not needed on v6e/v7x.
            pl.BlockSpec((TB, D_IN), lambda i: (i, 0)),
            const(w1), const(w2), const(w3), const(b_packed),
        ],
        # Batch-in-lanes output row; ragged-tail writes are masked by Pallas.
        out_specs=pl.BlockSpec((1, TB), lambda i: (0, i)),
        compiler_params=pltpu.CompilerParams(
            dimension_semantics=("parallel",),
            vmem_limit_bytes=48 * 1024 * 1024),
        cost_estimate=pl.CostEstimate(
            flops=flops, transcendentals=B, bytes_accessed=bytes_accessed),
    )(x, w1, w2, w3, b_packed)

    return out.reshape(B, 1)


def init_params(key):
    """PyTorch nn.Linear-style init: uniform(-1/sqrt(fan_in), +1/sqrt(fan_in)).
    Weights stored PyTorch-layout (out, in); biases 1-D (out,)."""
    def linear(k, fan_in, fan_out):
        kw, kb = jax.random.split(k)
        bound = 1.0 / jnp.sqrt(fan_in)
        w = jax.random.uniform(kw, (fan_out, fan_in), jnp.float32, -bound, bound)
        b = jax.random.uniform(kb, (fan_out,), jnp.float32, -bound, bound)
        return w, b

    k1, k2, k3 = jax.random.split(key, 3)
    w1, b1 = linear(k1, D_IN, D_H1)
    w2, b2 = linear(k2, D_H1, D_H2)
    w3, b3 = linear(k3, D_H2, D_OUT)
    return w1, b1, w2, b2, w3, b3


def reference_forward(x, params):
    w1, b1, w2, b2, w3, b3 = params
    h1 = jax.nn.relu(x @ w1.T + b1)
    h2 = jax.nn.relu(h1 @ w2.T + b2)
    return jax.nn.sigmoid(h2 @ w3.T + b3)


if __name__ == "__main__":
    key = jax.random.PRNGKey(0)
    k_params, k_x1, k_x2 = jax.random.split(key, 3)

    params = init_params(k_params)
    w1, b1, w2, b2, w3, b3 = params
    b_packed = pack_biases(b1, b2, b3)        # one-time, outside the hot path

    # Small smoke test: batch=8 -> a single full-array block.
    x_small = jax.random.normal(k_x1, (8, D_IN), jnp.float32)
    out_small = jax.block_until_ready(
        policy_net_forward(x_small, w1, w2, w3, b_packed))
    ref_small = reference_forward(x_small, params)
    assert out_small.shape == (8, 1)
    assert jnp.allclose(out_small, ref_small, atol=5e-3, rtol=0.0), \
        "mismatch vs f32 reference (small batch)"

    # Ragged multi-block check: B=300 with 128-row tiles (3 blocks, last block
    # ragged) exercises the parallel grid and the masked tail writes.
    x_rag = jax.random.normal(k_x2, (300, D_IN), jnp.float32)
    out_rag = jax.block_until_ready(
        policy_net_forward(x_rag, w1, w2, w3, b_packed, block_rows=128))
    ref_rag = reference_forward(x_rag, params)
    assert out_rag.shape == (300, 1)
    assert jnp.allclose(out_rag, ref_rag, atol=5e-3, rtol=0.0), \
        "mismatch vs f32 reference (ragged multi-block batch)"

    print("KERNEL_OK")
</pallas_src>

<mosaic_0001>
module attributes {stable_mosaic.version = 11 : i64} {
  func.func @policy_net_kernel(%arg0: i32, %arg1: memref<8x30xf32, #tpu.memory_space<vmem>>, %arg2: memref<24x30xf32, #tpu.memory_space<vmem>>, %arg3: memref<36x24xf32, #tpu.memory_space<vmem>>, %arg4: memref<1x36xf32, #tpu.memory_space<vmem>>, %arg5: memref<80x1xf32, #tpu.memory_space<vmem>>, %arg6: memref<1x8xf32, #tpu.memory_space<vmem>>) attributes {dimension_semantics = [#tpu.dimension_semantics<parallel>], iteration_bounds = array<i64: 1>, scalar_prefetch = 0 : i64, scratch_operands = 0 : i64, tpu.core_type = #tpu.core_type<tc>, window_params = [{transform_indices = @transform_0, window_bounds = array<i64: 8, 30>}, {pipeline_mode = #tpu.pipeline_mode<synchronous>, transform_indices = @transform_1, window_bounds = array<i64: 24, 30>}, {pipeline_mode = #tpu.pipeline_mode<synchronous>, transform_indices = @transform_2, window_bounds = array<i64: 36, 24>}, {pipeline_mode = #tpu.pipeline_mode<synchronous>, transform_indices = @transform_3, window_bounds = array<i64: 1, 36>}, {pipeline_mode = #tpu.pipeline_mode<synchronous>, transform_indices = @transform_4, window_bounds = array<i64: 80, 1>}, {transform_indices = @transform_5, window_bounds = array<i64: 1, 8>}]} {
    %c0 = arith.constant 0 : index
    %c0_0 = arith.constant 0 : index
    %0 = vector.load %arg1[%c0, %c0_0] : memref<8x30xf32, #tpu.memory_space<vmem>>, vector<8x30xf32>
    %c0_1 = arith.constant 0 : index
    %c0_2 = arith.constant 0 : index
    %1 = vector.load %arg2[%c0_1, %c0_2] : memref<24x30xf32, #tpu.memory_space<vmem>>, vector<24x30xf32>
    %cst = arith.constant dense<0.000000e+00> : vector<24x8xf32>
    %2 = tpu.matmul %1, %0, %cst {dimension_numbers = #tpu.dot_dimension_numbers<[1], [1], [0], [0], [0, 0, 1, 0], [], []>} : vector<24x30xf32>, vector<8x30xf32>, vector<24x8xf32> -> vector<24x8xf32>
    %c0_3 = arith.constant 0 : index
    %c0_4 = arith.constant 0 : index
    %3 = vector.load %arg5[%c0_3, %c0_4] : memref<80x1xf32, #tpu.memory_space<vmem>>, vector<24x1xf32>
    %4 = vector.broadcast %3 : vector<24x1xf32> to vector<24x8xf32>
    %5 = arith.addf %2, %4 : vector<24x8xf32>
    %cst_5 = arith.constant 0.000000e+00 : f32
    %6 = vector.broadcast %cst_5 : f32 to vector<24x8xf32>
    %7 = arith.maximumf %5, %6 : vector<24x8xf32>
    %c0_6 = arith.constant 0 : index
    %c0_7 = arith.constant 0 : index
    %8 = vector.load %arg3[%c0_6, %c0_7] : memref<36x24xf32, #tpu.memory_space<vmem>>, vector<36x24xf32>
    %cst_8 = arith.constant dense<0.000000e+00> : vector<36x8xf32>
    %9 = tpu.matmul %8, %7, %cst_8 {dimension_numbers = #tpu.dot_dimension_numbers<[1], [0], [0], [1], [0, 0, 1, 1], [], []>} : vector<36x24xf32>, vector<24x8xf32>, vector<36x8xf32> -> vector<36x8xf32>
    %c32 = arith.constant 32 : index
    %c0_9 = arith.constant 0 : index
    %10 = vector.load %arg5[%c32, %c0_9] : memref<80x1xf32, #tpu.memory_space<vmem>>, vector<36x1xf32>
    %11 = vector.broadcast %10 : vector<36x1xf32> to vector<36x8xf32>
    %12 = arith.addf %9, %11 : vector<36x8xf32>
    %cst_10 = arith.constant 0.000000e+00 : f32
    %13 = vector.broadcast %cst_10 : f32 to vector<36x8xf32>
    %14 = arith.maximumf %12, %13 : vector<36x8xf32>
    %c0_11 = arith.constant 0 : index
    %c0_12 = arith.constant 0 : index
    %15 = vector.load %arg4[%c0_11, %c0_12] : memref<1x36xf32, #tpu.memory_space<vmem>>, vector<1x36xf32>
    %cst_13 = arith.constant dense<0.000000e+00> : vector<1x8xf32>
    %16 = tpu.matmul %15, %14, %cst_13 {dimension_numbers = #tpu.dot_dimension_numbers<[1], [0], [0], [1], [0, 0, 1, 1], [], []>} : vector<1x36xf32>, vector<36x8xf32>, vector<1x8xf32> -> vector<1x8xf32>
    %c72 = arith.constant 72 : index
    %c0_14 = arith.constant 0 : index
    %17 = vector.load %arg5[%c72, %c0_14] : memref<80x1xf32, #tpu.memory_space<vmem>>, vector<1x1xf32>
    %18 = vector.broadcast %17 : vector<1x1xf32> to vector<1x8xf32>
    %19 = arith.addf %16, %18 : vector<1x8xf32>
    %20 = arith.negf %19 : vector<1x8xf32>
    %21 = math.exp %20 : vector<1x8xf32>
    %cst_15 = arith.constant 1.000000e+00 : f32
    %22 = vector.broadcast %cst_15 : f32 to vector<1x8xf32>
    %23 = arith.addf %22, %21 : vector<1x8xf32>
    %24 = arith.divf %22, %23 : vector<1x8xf32>
    %c0_16 = arith.constant 0 : index
    %c0_17 = arith.constant 0 : index
    %25 = vector.load %arg6[%c0_16, %c0_17] : memref<1x8xf32, #tpu.memory_space<vmem>>, vector<1x8xf32>
    tpu.vector_store %arg6[%c0_16, %c0_17], %24 {strides = array<i32>} : memref<1x8xf32, #tpu.memory_space<vmem>>, vector<1x8xf32>,
    return
  }
  func.func @transform_0(%arg0: i32) -> (i32, i32) {
    %c0_i32 = arith.constant 0 : i32
    %c0_i32_0 = arith.constant 0 : i32
    return %arg0, %c0_i32 : i32, i32
  }
  func.func @transform_1(%arg0: i32) -> (i32, i32) {
    %c0_i32 = arith.constant 0 : i32
    %c0_i32_0 = arith.constant 0 : i32
    %c0_i32_1 = arith.constant 0 : i32
    return %c0_i32, %c0_i32_0 : i32, i32
  }
  func.func @transform_2(%arg0: i32) -> (i32, i32) {
    %c0_i32 = arith.constant 0 : i32
    %c0_i32_0 = arith.constant 0 : i32
    %c0_i32_1 = arith.constant 0 : i32
    return %c0_i32, %c0_i32_0 : i32, i32
  }
  func.func @transform_3(%arg0: i32) -> (i32, i32) {
    %c0_i32 = arith.constant 0 : i32
    %c0_i32_0 = arith.constant 0 : i32
    %c0_i32_1 = arith.constant 0 : i32
    return %c0_i32, %c0_i32_0 : i32, i32
  }
  func.func @transform_4(%arg0: i32) -> (i32, i32) {
    %c0_i32 = arith.constant 0 : i32
    %c0_i32_0 = arith.constant 0 : i32
    %c0_i32_1 = arith.constant 0 : i32
    return %c0_i32, %c0_i32_0 : i32, i32
  }
  func.func @transform_5(%arg0: i32) -> (i32, i32) {
    %c0_i32 = arith.constant 0 : i32
    %c0_i32_0 = arith.constant 0 : i32
    return %c0_i32, %arg0 : i32, i32
  }
}

</mosaic_0001>

<llo_original>
// kernel: tpu_custom_call.1
$region0: #{tpu_custom_call.1}
  #allocation0 [shape = 'u32[]', space=smem, size = 0x4, offset = 0x4, fixed_abs, tag = 'smem constant byte address 0x4 - core index']
  #allocation1 [shape = 'u32[144,128]{1,0:T(1,128)}', space=vmem, size = 0x12000, scoped, tag = 'internal scratch']
  %s0 = inlined_call_operand.vmem [shape: f32[8,30], index: 0, kind: input, shape index: {}]
  %s1 = inlined_call_operand.vmem [shape: f32[24,30], index: 1, kind: input, shape index: {}]
  %s2 = inlined_call_operand.vmem [shape: f32[36,24], index: 2, kind: input, shape index: {}]
  %s3 = inlined_call_operand.vmem [shape: f32[1,36], index: 3, kind: input, shape index: {}]
  %s4 = inlined_call_operand.vmem [shape: f32[80,1], index: 4, kind: input, shape index: {}]
  %s5 = inlined_call_operand.hbm [shape: f32[1,8], index: 5, kind: output, shape index: {}]
  %s6 = sld [smem:[#allocation0]]
  $region30: #{tpu_custom_call.1} parent=0
    _
  %s8 = ssub.s32 1, %s6
  %s9 = scalar_select 0, %s8, %s6
  $region1: #{tpu_custom_call.1} parent=0
    #allocation2 [shape = 'u8[512]{0}', space=vmem, size = 0x400, scoped, tag = 'output window, operand 0, single buffered']
    #allocation3 [shape = 's32[1]{0}', space=sflag, size = 0x4, scoped, tag = 'scoped memory for tpu_custom_call.1']
    %10 = vsyncpa [#allocation3], 0
    // Predicated region
    $region2: #{tpu_custom_call.1} parent=1 // pred_check
      _
    $region3: #{tpu_custom_call.1} parent=1 // pred_check_branch
      %12 = sbr.rel (0) target = $region5
    $region4: #{tpu_custom_call.1} parent=1 // pred_region
      _
    $region5: #{tpu_custom_call.1} parent=1 // pred_fallthru
      _
    // Predicated region
    $region6: #{tpu_custom_call.1} parent=1 // pred_check
      _
    $region7: #{tpu_custom_call.1} parent=1 // pred_check_branch
      %14 = sbr.rel (0) target = $region9
    $region8: #{tpu_custom_call.1} parent=1 // pred_region
      _
    $region9: #{tpu_custom_call.1} parent=1 // pred_fallthru
      _
    // Predicated region
    $region10: #{tpu_custom_call.1} parent=1 // pred_check
      _
    $region11: #{tpu_custom_call.1} parent=1 // pred_check_branch
      %16 = sbr.rel (0) target = $region13
    $region12: #{tpu_custom_call.1} parent=1 // pred_region
      _
    $region13: #{tpu_custom_call.1} parent=1 // pred_fallthru
      _
    // Predicated region
    $region14: #{tpu_custom_call.1} parent=1 // pred_check
      _
    $region15: #{tpu_custom_call.1} parent=1 // pred_check_branch
      %18 = sbr.rel (0) target = $region17
    $region16: #{tpu_custom_call.1} parent=1 // pred_region
      _
    $region17: #{tpu_custom_call.1} parent=1 // pred_fallthru
      _
    // Predicated region
    $region18: #{tpu_custom_call.1} parent=1 // pred_check
      _
    $region19: #{tpu_custom_call.1} parent=1 // pred_check_branch
      %20 = sbr.rel (0) target = $region21
    $region20: #{tpu_custom_call.1} parent=1 // pred_region
      _
    $region21: #{tpu_custom_call.1} parent=1 // pred_fallthru
      _
    %v21 = vld [vmem:[%s0] sm:$0xff]
    %v22 = vld [vmem:[%s1] sm:$0xff]
    %v23 = vld [vmem:[%s1 + $0x8] sm:$0xff]
    %v24 = vld [vmem:[%s1 + $0x10] sm:$0xff]
    %v25 = vld [vmem:[%s4] sm:$0xff]
    %v26 = vld [vmem:[%s4 + $0x8] sm:$0xff]
    %v27 = vld [vmem:[%s4 + $0x10] sm:$0xff]
    %29 = vset.pattern.permute.xlu0 0
    %30 = vperm.xlu0 %29, %v25
    %v31 = vpop.permute.xlu0 %30
    %34 = vset.pattern.permute.xlu0 0
    %35 = vperm.xlu0 %34, %v26
    %v36 = vpop.permute.xlu0 %35
    %39 = vset.pattern.permute.xlu0 0
    %40 = vperm.xlu0 %39, %v27
    %v41 = vpop.permute.xlu0 %40
    %vm43 = vcmask 244736
    %v45 = vsel %vm43, %v22, 0
    %v48 = vsel %vm43, %v23, 0
    %v51 = vsel %vm43, %v24, 0
    %v54 = vsel %vm43, %v21, 0
    %56 = vmatprep.subr.mxu0 0.0
    %57 = vmatpush1.xpose.msra.mxu0 0.0
    %58 = vmatprep.subr.mxu0 0.0
    %59 = vmatpush1.xpose.msra.mxu0 0.0
    %60 = vmatprep.subr.mxu0 0.0
    %61 = vmatpush1.xpose.msra.mxu0 0.0
    %62 = vmatprep.subr.mxu0 0.0
    %63 = vmatpush1.xpose.msra.mxu0 0.0
    %64 = vmatprep.subr.mxu0 0.0
    %65 = vmatpush1.xpose.msra.mxu0 0.0
    %66 = vmatprep.subr.mxu0 0.0
    %67 = vmatpush1.xpose.msra.mxu0 0.0
    %68 = vmatprep.subr.mxu0 0.0
    %69 = vmatpush1.xpose.msra.mxu0 0.0
    %70 = vmatprep.subr.mxu0 0.0
    %71 = vmatpush1.xpose.msra.mxu0 0.0
    %72 = vmatprep.subr.mxu0 0.0
    %73 = vmatpush1.xpose.msra.mxu0 0.0
    %74 = vmatprep.subr.mxu0 0.0
    %75 = vmatpush1.xpose.msra.mxu0 0.0
    %76 = vmatprep.subr.mxu0 0.0
    %77 = vmatpush1.xpose.msra.mxu0 0.0
    %78 = vmatprep.subr.mxu0 0.0
    %79 = vmatpush1.xpose.msra.mxu0 0.0
    %80 = vmatprep.subr.mxu0 0.0
    %81 = vmatpush1.xpose.msra.mxu0 0.0
    %82 = vmatprep.subr.mxu0 0.0
    %83 = vmatpush1.xpose.msra.mxu0 0.0
    %84 = vmatprep.subr.mxu0 0.0
    %85 = vmatpush1.xpose.msra.mxu0 0.0
    %86 = vmatprep.subr.mxu0 0.0
    %87 = vmatpush1.xpose.msra.mxu0 %v54
    %88 = vmatprep.subr.mxu0 0.0
    %89 = vmatpush2.xpose.msra.mxu0 0.0
    %90 = vmatprep.subr.mxu0 0.0
    %91 = vmatpush2.xpose.msra.mxu0 0.0
    %92 = vmatprep.subr.mxu0 0.0
    %93 = vmatpush2.xpose.msra.mxu0 0.0
    %94 = vmatprep.subr.mxu0 0.0
    %95 = vmatpush2.xpose.msra.mxu0 0.0
    %96 = vmatprep.subr.mxu0 0.0
    %97 = vmatpush2.xpose.msra.mxu0 0.0
    %98 = vmatprep.subr.mxu0 0.0
    %99 = vmatpush2.xpose.msra.mxu0 0.0
    %100 = vmatprep.subr.mxu0 0.0
    %101 = vmatpush2.xpose.msra.mxu0 0.0
    %102 = vmatprep.subr.mxu0 0.0
    %103 = vmatpush2.xpose.msra.mxu0 0.0
    %104 = vmatprep.subr.mxu0 0.0
    %105 = vmatpush2.xpose.msra.mxu0 0.0
    %106 = vmatprep.subr.mxu0 0.0
    %107 = vmatpush2.xpose.msra.mxu0 0.0
    %108 = vmatprep.subr.mxu0 0.0
    %109 = vmatpush2.xpose.msra.mxu0 0.0
    %110 = vmatprep.subr.mxu0 0.0
    %111 = vmatpush2.xpose.msra.mxu0 0.0
    %112 = vmatprep.subr.mxu0 0.0
    %113 = vmatpush2.xpose.msra.mxu0 0.0
    %114 = vmatprep.subr.mxu0 0.0
    %115 = vmatpush2.xpose.msra.mxu0 0.0
    %116 = vmatprep.subr.mxu0 0.0
    %117 = vmatpush2.xpose.msra.mxu0 0.0
    %118 = vmatprep.subr.mxu0 0.0
    %119 = vmatpush2.xpose.msra.mxu0 0.0
    %120 = vmatprep.mubr.f32.mxu0 0.0
    %121 = vmatmul.mubr.f32.gmra.mxu0 %v45
    %v122 = vpop.f32.mrf.mxu0
    %v123 = vadd.f32 %v31, %v122
    %v124 = vpop.f32.mrf.mxu0
    %125 = vmatprep.mubr.f32.mxu0 0.0
    %126 = vmatmul.mubr.f32.gmra.mxu0 %v48
    %v127 = vpop.f32.mrf.mxu0
    %v128 = vadd.f32 %v36, %v127
    %v129 = vpop.f32.mrf.mxu0
    %130 = vmatprep.mubr.f32.mxu0 0.0
    %131 = vmatmul.mubr.f32.gmra.mxu0 %v51
    %v132 = vpop.f32.mrf.mxu0
    %v133 = vadd.f32 %v41, %v132
    %v134 = vpop.f32.mrf.mxu0
    %135 = vdwg.mxu0
    %v136 = vmax.f32 %v123, 0.0
    %v137 = vmax.f32 %v128, 0.0
    %v138 = vmax.f32 %v133, 0.0
    %v139 = vld [vmem:[%s2] sm:$0xff]
    %v140 = vld [vmem:[%s2 + $0x8] sm:$0xff]
    %v141 = vld [vmem:[%s2 + $0x10] sm:$0xff]
    %v142 = vld [vmem:[%s2 + $0x18] sm:$0xff]
    %v143 = vld [vmem:[%s2 + $0x20] sm:$0xf]
    %v144 = vld [vmem:[%s4 + $0x20] sm:$0xff]
    %v145 = vld [vmem:[%s4 + $0x28] sm:$0xff]
    %v146 = vld [vmem:[%s4 + $0x30] sm:$0xff]
    %v147 = vld [vmem:[%s4 + $0x38] sm:$0xff]
    %v148 = vld [vmem:[%s4 + $0x40] sm:$0xf]
    %150 = vset.pattern.permute.xlu0 0
    %151 = vperm.xlu0 %150, %v144
    %v152 = vpop.permute.xlu0 %151
    %155 = vset.pattern.permute.xlu0 0
    %156 = vperm.xlu0 %155, %v145
    %v157 = vpop.permute.xlu0 %156
    %160 = vset.pattern.permute.xlu0 0
    %161 = vperm.xlu0 %160, %v146
    %v162 = vpop.permute.xlu0 %161
    %165 = vset.pattern.permute.xlu0 0
    %166 = vperm.xlu0 %165, %v147
    %v167 = vpop.permute.xlu0 %166
    %170 = vset.pattern.permute.xlu0 0
    %171 = vperm.xlu0 %170, %v148
    %v172 = vpop.permute.xlu0 %171
    %vm174 = vcmask 195584
    %v176 = vsel %vm174, %v139, 0
    %v179 = vsel %vm174, %v140, 0
    %v182 = vsel %vm174, %v141, 0
    %v185 = vsel %vm174, %v142, 0
    %v188 = vsel %vm174, %v143, 0
    %190 = vmatprep.subr.mxu0 0.0
    %191 = vmatpush1.msra.mxu0 0.0
    %192 = vmatprep.subr.mxu0 0.0
    %193 = vmatpush1.msra.mxu0 0.0
    %194 = vmatprep.subr.mxu0 0.0
    %195 = vmatpush1.msra.mxu0 0.0
    %196 = vmatprep.subr.mxu0 0.0
    %197 = vmatpush1.msra.mxu0 0.0
    %198 = vmatprep.subr.mxu0 0.0
    %199 = vmatpush1.msra.mxu0 0.0
    %200 = vmatprep.subr.mxu0 0.0
    %201 = vmatpush1.msra.mxu0 0.0
    %202 = vmatprep.subr.mxu0 0.0
    %203 = vmatpush1.msra.mxu0 0.0
    %204 = vmatprep.subr.mxu0 0.0
    %205 = vmatpush1.msra.mxu0 0.0
    %206 = vmatprep.subr.mxu0 0.0
    %207 = vmatpush1.msra.mxu0 0.0
    %208 = vmatprep.subr.mxu0 0.0
    %209 = vmatpush1.msra.mxu0 0.0
    %210 = vmatprep.subr.mxu0 0.0
    %211 = vmatpush1.msra.mxu0 0.0
    %212 = vmatprep.subr.mxu0 0.0
    %213 = vmatpush1.msra.mxu0 0.0
    %214 = vmatprep.subr.mxu0 0.0
    %215 = vmatpush1.msra.mxu0 0.0
    %216 = vmatprep.subr.mxu0 0.0
    %217 = vmatpush1.msra.mxu0 %v138
    %218 = vmatprep.subr.mxu0 0.0
    %219 = vmatpush1.msra.mxu0 %v137
    %220 = vmatprep.subr.mxu0 0.0
    %221 = vmatpush1.msra.mxu0 %v136
    %222 = vmatprep.subr.mxu0 0.0
    %223 = vmatpush2.msra.mxu0 0.0
    %224 = vmatprep.subr.mxu0 0.0
    %225 = vmatpush2.msra.mxu0 0.0
    %226 = vmatprep.subr.mxu0 0.0
    %227 = vmatpush2.msra.mxu0 0.0
    %228 = vmatprep.subr.mxu0 0.0
    %229 = vmatpush2.msra.mxu0 0.0
    %230 = vmatprep.subr.mxu0 0.0
    %231 = vmatpush2.msra.mxu0 0.0
    %232 = vmatprep.subr.mxu0 0.0
    %233 = vmatpush2.msra.mxu0 0.0
    %234 = vmatprep.subr.mxu0 0.0
    %235 = vmatpush2.msra.mxu0 0.0
    %236 = vmatprep.subr.mxu0 0.0
    %237 = vmatpush2.msra.mxu0 0.0
    %238 = vmatprep.subr.mxu0 0.0
    %239 = vmatpush2.msra.mxu0 0.0
    %240 = vmatprep.subr.mxu0 0.0
    %241 = vmatpush2.msra.mxu0 0.0
    %242 = vmatprep.subr.mxu0 0.0
    %243 = vmatpush2.msra.mxu0 0.0
    %244 = vmatprep.subr.mxu0 0.0
    %245 = vmatpush2.msra.mxu0 0.0
    %246 = vmatprep.subr.mxu0 0.0
    %247 = vmatpush2.msra.mxu0 0.0
    %248 = vmatprep.subr.mxu0 0.0
    %249 = vmatpush2.msra.mxu0 0.0
    %250 = vmatprep.subr.mxu0 0.0
    %251 = vmatpush2.msra.mxu0 0.0
    %252 = vmatprep.subr.mxu0 0.0
    %253 = vmatpush2.msra.mxu0 0.0
    %254 = vmatprep.mubr.f32.mxu0 0.0
    %255 = vmatmul.mubr.f32.gmra.mxu0 %v176
    %v256 = vpop.f32.mrf.mxu0
    %v257 = vadd.f32 %v152, %v256
    %v258 = vpop.f32.mrf.mxu0
    %259 = vmatprep.mubr.f32.mxu0 0.0
    %260 = vmatmul.mubr.f32.gmra.mxu0 %v179
    %v261 = vpop.f32.mrf.mxu0
    %v262 = vadd.f32 %v157, %v261
    %v263 = vpop.f32.mrf.mxu0
    %264 = vmatprep.mubr.f32.mxu0 0.0
    %265 = vmatmul.mubr.f32.gmra.mxu0 %v182
    %v266 = vpop.f32.mrf.mxu0
    %v267 = vadd.f32 %v162, %v266
    %v268 = vpop.f32.mrf.mxu0
    %269 = vmatprep.mubr.f32.mxu0 0.0
    %270 = vmatmul.mubr.f32.gmra.mxu0 %v185
    %v271 = vpop.f32.mrf.mxu0
    %v272 = vadd.f32 %v167, %v271
    %v273 = vpop.f32.mrf.mxu0
    %274 = vmatprep.mubr.f32.mxu0 0.0
    %275 = vmatmul.mubr.f32.gmra.mxu0 %v188
    %v276 = vpop.f32.mrf.mxu0
    %v277 = vadd.f32 %v172, %v276
    %v278 = vpop.f32.mrf.mxu0
    %279 = vdwg.mxu0
    %v280 = vmax.f32 %v257, 0.0
    %v281 = vmax.f32 %v262, 0.0
    %v282 = vmax.f32 %v267, 0.0
    %v283 = vmax.f32 %v272, 0.0
    %v284 = vmax.f32 %v277, 0.0
    %v285 = vld [vmem:[%s3] sm:$0x1]
    %v286 = vld [vmem:[%s4 + $0x48] sm:$0x1]
    %288 = vset.pattern.permute.xlu0 0
    %289 = vperm.xlu0 %288, %v286
    %v290 = vpop.permute.xlu0 %289
    %vm292 = vcmask 293888
    %v294 = vsel %vm292, %v285, 0
    %vm296 = vcmask 1043456
    %v298 = vsel %vm296, %v284, 0
    %300 = vmatprep.subr.mxu0 0.0
    %301 = vmatpush1.msra.mxu0 0.0
    %302 = vmatprep.subr.mxu0 0.0
    %303 = vmatpush1.msra.mxu0 0.0
    %304 = vmatprep.subr.mxu0 0.0
    %305 = vmatpush1.msra.mxu0 0.0
    %306 = vmatprep.subr.mxu0 0.0
    %307 = vmatpush1.msra.mxu0 0.0
    %308 = vmatprep.subr.mxu0 0.0
    %309 = vmatpush1.msra.mxu0 0.0
    %310 = vmatprep.subr.mxu0 0.0
    %311 = vmatpush1.msra.mxu0 0.0
    %312 = vmatprep.subr.mxu0 0.0
    %313 = vmatpush1.msra.mxu0 0.0
    %314 = vmatprep.subr.mxu0 0.0
    %315 = vmatpush1.msra.mxu0 0.0
    %316 = vmatprep.subr.mxu0 0.0
    %317 = vmatpush1.msra.mxu0 0.0
    %318 = vmatprep.subr.mxu0 0.0
    %319 = vmatpush1.msra.mxu0 0.0
    %320 = vmatprep.subr.mxu0 0.0
    %321 = vmatpush1.msra.mxu0 0.0
    %322 = vmatprep.subr.mxu0 0.0
    %323 = vmatpush1.msra.mxu0 %v298
    %324 = vmatprep.subr.mxu0 0.0
    %325 = vmatpush1.msra.mxu0 %v283
    %326 = vmatprep.subr.mxu0 0.0
    %327 = vmatpush1.msra.mxu0 %v282
    %328 = vmatprep.subr.mxu0 0.0
    %329 = vmatpush1.msra.mxu0 %v281
    %330 = vmatprep.subr.mxu0 0.0
    %331 = vmatpush1.msra.mxu0 %v280
    %332 = vmatprep.subr.mxu0 0.0
    %333 = vmatpush2.msra.mxu0 0.0
    %334 = vmatprep.subr.mxu0 0.0
    %335 = vmatpush2.msra.mxu0 0.0
    %336 = vmatprep.subr.mxu0 0.0
    %337 = vmatpush2.msra.mxu0 0.0
    %338 = vmatprep.subr.mxu0 0.0
    %339 = vmatpush2.msra.mxu0 0.0
    %340 = vmatprep.subr.mxu0 0.0
    %341 = vmatpush2.msra.mxu0 0.0
    %342 = vmatprep.subr.mxu0 0.0
    %343 = vmatpush2.msra.mxu0 0.0
    %344 = vmatprep.subr.mxu0 0.0
    %345 = vmatpush2.msra.mxu0 0.0
    %346 = vmatprep.subr.mxu0 0.0
    %347 = vmatpush2.msra.mxu0 0.0
    %348 = vmatprep.subr.mxu0 0.0
    %349 = vmatpush2.msra.mxu0 0.0
    %350 = vmatprep.subr.mxu0 0.0
    %351 = vmatpush2.msra.mxu0 0.0
    %352 = vmatprep.subr.mxu0 0.0
    %353 = vmatpush2.msra.mxu0 0.0
    %354 = vmatprep.subr.mxu0 0.0
    %355 = vmatpush2.msra.mxu0 0.0
    %356 = vmatprep.subr.mxu0 0.0
    %357 = vmatpush2.msra.mxu0 0.0
    %358 = vmatprep.subr.mxu0 0.0
    %359 = vmatpush2.msra.mxu0 0.0
    %360 = vmatprep.subr.mxu0 0.0
    %361 = vmatpush2.msra.mxu0 0.0
    %362 = vmatprep.subr.mxu0 0.0
    %363 = vmatpush2.msra.mxu0 0.0
    %364 = vmatprep.mubr.f32.mxu0 0.0
    %365 = vmatmul.mubr.f32.gmra.mxu0 %v294
    %v366 = vpop.f32.mrf.mxu0
    %v367 = vadd.f32 %v290, %v366
    %v368 = vpop.f32.mrf.mxu0
    %369 = vdwg.mxu0
    %v370 = vxor.u32 %v367, 2147483648
    %v371 = vmul.f32 %v370, 1.442695
    %v372 = vpow.pop %v371
    %v373 = vadd.f32 %v372, 1.0
    %v374 = vrcp.pop %v373
    %v375 = vmul.f32 1.0, %v374
    %vm376 = vcmask 57344
    %377 = vst.msk [vmem:[#allocation2] sm:$0x1] %vm376, %v375
    // Predicated region
    $region22: #{tpu_custom_call.1} parent=1 // pred_check
      _
    $region23: #{tpu_custom_call.1} parent=1 // pred_check_branch
      %379 = sbr.rel (0) target = $region25
    $region24: #{tpu_custom_call.1} parent=1 // pred_region
      %s381 = ssub.s32 16, 16
      %382 = vsyncadd [#allocation3], %s381
      %s384 = sshll.u32 [#allocation2], 4
      %s385 = int_to_ptr.vmem [resolvable:$true] %s384
      %387 = dma.vmem_to_hbm [thread:$0]  %s385, 16, %s5, [#allocation3]
    $region25: #{tpu_custom_call.1} parent=1 // pred_fallthru
      _
    // Predicated region
    $region26: #{tpu_custom_call.1} parent=1 // pred_check
      _
    $region27: #{tpu_custom_call.1} parent=1 // pred_check_branch
      %389 = sbr.rel (0) target = $region29
    $region28: #{tpu_custom_call.1} parent=1 // pred_region
      %390 = dma.done [#allocation3], 16
    $region29: #{tpu_custom_call.1} parent=1 // pred_fallthru
      _
    %391 = vsyncpa [#allocation3], 1

</llo_original>
